<compile_context>
chip_gen: v7x
topology: tpu7x:2x2x1
jax: 0.10.0
libtpu: 0.0.40
codegen_flags: <defaults>
</compile_context>

<pallas_src>
import functools

import jax
import jax.numpy as jnp
from jax.experimental import pallas as pl
from jax.experimental.pallas import tpu as pltpu


_VMEM = pl.BlockSpec(memory_space=pltpu.MemorySpace.VMEM)


# --------------------------------------------------------------------------
# One-time probe of pltpu.roll's lane-rotation sign (the 32-lane f/o gate
# alignments are direction-sensitive; the 64-lane g alignment is not).
# --------------------------------------------------------------------------
def probe_roll_like_jnp() -> bool:
    def k(x_ref, o_ref):
        o_ref[...] = pltpu.roll(x_ref[...], 1, axis=1)

    x = jnp.broadcast_to(jnp.arange(128, dtype=jnp.float32), (8, 128))
    got = pl.pallas_call(
        k,
        out_shape=jax.ShapeDtypeStruct((8, 128), jnp.float32),
        in_specs=[_VMEM],
        out_specs=_VMEM,
    )(x)
    # jnp.roll convention: data moves to higher lane indices -> out[:, 1] == 0.
    return bool(got[0, 1] == 0.0)


# --------------------------------------------------------------------------
# Pallas kernel: wavefront multi-layer LSTM + sigmoid + final Linear,
# fully VMEM/vreg-resident, statically unrolled (shapes are tiny).
# --------------------------------------------------------------------------
def make_lstm_kernel(num_layers: int, seq_len: int, batch_padded: int,
                     hidden_dim: int, roll_like_jnp: bool):
    L, T, Bp, H = num_layers, seq_len, batch_padded, hidden_dim
    G = 4 * H                                   # gate width per layer (=128)

    def shift_to_front(block):                  # lane shift: gate block -> lanes 0:H
        return (((4 - block) % 4) if roll_like_jnp else (block % 4)) * H

    f_shift = shift_to_front(1)
    g_shift = shift_to_front(2)                 # == 2H under either convention
    o_shift = shift_to_front(3)

    def lstm_cell(gates, c_prev):
        # gates, c_prev: (Bp, 4H) f32.  PyTorch lane order [i|f|g|o]; the real
        # cell state lives in lanes 0:H of c_prev (other lanes are bounded junk).
        sg = jax.nn.sigmoid(gates)                      # full width: i, f, o valid
        tg = jnp.tanh(gates)                            # full width: g valid
        f_al = pltpu.roll(sg, f_shift, axis=1)          # f -> lanes 0:H  (XLU)
        g_al = pltpu.roll(tg, g_shift, axis=1)          # g -> lanes 0:H
        o_al = pltpu.roll(sg, o_shift, axis=1)          # o -> lanes 0:H
        c_new = f_al * c_prev + sg * g_al               # f*c + i*g, valid lanes 0:H
        h_new = o_al * jnp.tanh(c_new)                  # valid lanes 0:H
        return h_new, c_new

    def kernel(x_ref, w_in0_ref, b0_ref, w_rec_ref, b_rec_ref,
               w_fc_ref, b_fc_ref, out_ref):
        # (1) Bulk layer-0 input projection for ALL timesteps: one matmul.
        gx0 = jnp.dot(x_ref[...], w_in0_ref[...],
                      preferred_element_type=jnp.float32) + b0_ref[...]
        # (T*Bp, 4H), time-major rows; (b_ih0 + b_hh0) already folded in.

        # Loop-invariant fused recurrent weight / bias, hoisted once.
        w_rec = w_rec_ref[...]                  # (L*H, L*4H)
        b_rec = b_rec_ref[...]                  # (1, L*4H); zeros in layer-0 block

        h = [jnp.zeros((Bp, G), jnp.float32) for _ in range(L)]
        c = [jnp.zeros((Bp, G), jnp.float32) for _ in range(L)]
        outs = []

        # (2) Wavefront: step s advances layer l at time t = s - l.  One fused
        # matmul per step supplies every active layer's recurrent term AND the
        # l>0 input projections from the previous layer's hidden state.
        for s in range(T + L - 1):
            if s == 0:
                gates_all = None                # all h are zero: recurrent term is 0
            else:
                h_pack = jnp.concatenate([h[l][:, :H] for l in range(L)], axis=1)
                gates_all = jnp.dot(h_pack, w_rec,
                                    preferred_element_type=jnp.float32) + b_rec
            for l in range(L):
                t = s - l
                if t < 0 or t >= T:
                    continue                    # layer inactive at this boundary step
                if l == 0:
                    gx_t = gx0[t * Bp:(t + 1) * Bp, :]
                    gates = gx_t if gates_all is None else gates_all[:, :G] + gx_t
                else:
                    gates = gates_all[:, l * G:(l + 1) * G]
                h[l], c[l] = lstm_cell(gates, c[l])
                if l == L - 1:
                    outs.append(h[l])           # full width; no per-step VMEM store

        # (3) fc(sigmoid(lstm_out)) over the whole sequence: one matmul, one
        # store.  W_fc is zero-padded to 4H rows so full-width hidden states
        # feed it directly (junk lanes hit zero rows) -- no 32-lane slicing.
        seq = jnp.concatenate(outs, axis=0)     # (T*Bp, 4H), time-major
        act = jax.nn.sigmoid(seq)
        out_ref[...] = jnp.dot(act, w_fc_ref[...],
                               preferred_element_type=jnp.float32) + b_fc_ref[...]

    return kernel


# --------------------------------------------------------------------------
# One-time parameter layout prep (done at init, not per forward call).
# --------------------------------------------------------------------------
def prepare_params(params, num_layers, hidden_dim, output_dim):
    L, H = num_layers, hidden_dim
    G = 4 * H

    w_ih0, w_hh0, b_ih0, b_hh0 = params["layer0"]
    w_in0 = jnp.asarray(w_ih0.T, jnp.float32)                 # (D, 4H)
    b0 = jnp.asarray((b_ih0 + b_hh0)[None, :], jnp.float32)   # (1, 4H)

    # Fused recurrent weight: column block l holds
    #   rows (l-1)*H : l*H  -> W_ih_l^T  (input from layer l-1's hidden state)
    #   rows  l*H : (l+1)*H -> W_hh_l^T  (own recurrence)
    w_rec = jnp.zeros((L * H, L * G), jnp.float32)
    b_rec = jnp.zeros((1, L * G), jnp.float32)
    for l in range(L):
        w_ih, w_hh, b_ih, b_hh = params[f"layer{l}"]
        w_rec = w_rec.at[l * H:(l + 1) * H, l * G:(l + 1) * G].set(w_hh.T)
        if l > 0:
            w_rec = w_rec.at[(l - 1) * H:l * H, l * G:(l + 1) * G].set(w_ih.T)
            b_rec = b_rec.at[0, l * G:(l + 1) * G].set(b_ih + b_hh)

    # FC weight zero-padded to 4H rows (kernel feeds full-width hidden states).
    w_fc, b_fc = params["fc"]
    w_fc_pad = jnp.zeros((G, output_dim), jnp.float32).at[:H, :].set(w_fc.T)
    b_fc_row = jnp.asarray(b_fc[None, :], jnp.float32)

    return dict(w_in0=w_in0, b0=b0, w_rec=w_rec, b_rec=b_rec,
                w_fc=w_fc_pad, b_fc=b_fc_row)


# --------------------------------------------------------------------------
# Wrapper: batch padding + pallas_call plumbing (fused into the caller's jit).
# --------------------------------------------------------------------------
def lstm_model_forward(x, prepped, *, hidden_dim, num_layers, output_dim,
                       roll_like_jnp):
    """x: (B, T, input_dim) float32 -> (B, T, output_dim) float32."""
    B, T, D = x.shape
    Bp = max(8, -(-B // 8) * 8)                 # pad batch to the sublane granule
    x_p = jnp.pad(x, ((0, Bp - B), (0, 0), (0, 0)))
    # Time-major flattened rows: row t*Bp + b == x_p[b, t, :]
    x_flat = jnp.transpose(x_p, (1, 0, 2)).reshape(T * Bp, D)

    inputs = (x_flat, prepped["w_in0"], prepped["b0"], prepped["w_rec"],
              prepped["b_rec"], prepped["w_fc"], prepped["b_fc"])

    out_flat = pl.pallas_call(
        make_lstm_kernel(num_layers, T, Bp, hidden_dim, roll_like_jnp),
        out_shape=jax.ShapeDtypeStruct((T * Bp, output_dim), jnp.float32),
        in_specs=[_VMEM] * len(inputs),
        out_specs=_VMEM,
    )(*inputs)
    # NOTE(v7x): with many sequences per call, add a leading ("parallel",)
    # batch grid + CompilerParams(dimension_semantics) to use both TensorCores.

    out = jnp.transpose(out_flat.reshape(T, Bp, output_dim), (1, 0, 2))
    return out[:B]


# --------------------------------------------------------------------------
# Pure-JAX reference (correctness check)
# --------------------------------------------------------------------------
def lstm_model_reference(x, params, *, hidden_dim, num_layers, output_dim):
    B, T, _ = x.shape
    H = hidden_dim
    hp = jax.lax.Precision.HIGHEST
    layer_in = x
    for l in range(num_layers):
        w_ih, w_hh, b_ih, b_hh = params[f"layer{l}"]
        h = jnp.zeros((B, H), jnp.float32)
        c = jnp.zeros((B, H), jnp.float32)
        outs = []
        for t in range(T):
            gates = (jnp.dot(layer_in[:, t, :], w_ih.T, precision=hp)
                     + jnp.dot(h, w_hh.T, precision=hp) + b_ih + b_hh)
            i_g = jax.nn.sigmoid(gates[:, 0:H])
            f_g = jax.nn.sigmoid(gates[:, H:2 * H])
            g_g = jnp.tanh(gates[:, 2 * H:3 * H])
            o_g = jax.nn.sigmoid(gates[:, 3 * H:4 * H])
            c = f_g * c + i_g * g_g
            h = o_g * jnp.tanh(c)
            outs.append(h)
        layer_in = jnp.stack(outs, axis=1)
    w_fc, b_fc = params["fc"]
    return jnp.dot(jax.nn.sigmoid(layer_in), w_fc.T, precision=hp) + b_fc


# --------------------------------------------------------------------------
# Deterministic parameter init (matches PyTorch shapes)
# --------------------------------------------------------------------------
def init_params(key, input_dim, hidden_dim, num_layers, output_dim):
    params = {}
    k = 1.0 / jnp.sqrt(hidden_dim)
    for l in range(num_layers):
        in_dim = input_dim if l == 0 else hidden_dim
        key, k1, k2, k3, k4 = jax.random.split(key, 5)
        params[f"layer{l}"] = (
            jax.random.uniform(k1, (4 * hidden_dim, in_dim), jnp.float32, -k, k),
            jax.random.uniform(k2, (4 * hidden_dim, hidden_dim), jnp.float32, -k, k),
            jax.random.uniform(k3, (4 * hidden_dim,), jnp.float32, -k, k),
            jax.random.uniform(k4, (4 * hidden_dim,), jnp.float32, -k, k),
        )
    key, k1, k2 = jax.random.split(key, 3)
    # fc: xavier_uniform weight, normal(std=1e-6) bias
    limit = jnp.sqrt(6.0 / (hidden_dim + output_dim))
    w_fc = jax.random.uniform(k1, (output_dim, hidden_dim), jnp.float32,
                              -limit, limit)
    b_fc = 1e-6 * jax.random.normal(k2, (output_dim,), jnp.float32)
    params["fc"] = (w_fc, b_fc)
    return params


if __name__ == "__main__":
    # Small shapes consistent with the module's forward: x is (batch, seq, input_dim)
    batch, seq, input_dim = 2, 8, 8
    hidden_dim, layer_dim, output_dim = 32, 2, 4

    key = jax.random.PRNGKey(0)
    key, xk = jax.random.split(key)
    x = jax.random.normal(xk, (batch, seq, input_dim), jnp.float32)
    params = init_params(key, input_dim, hidden_dim, layer_dim, output_dim)

    # Weight layout work done once, outside the per-call path.
    prepped = prepare_params(params, layer_dim, hidden_dim, output_dim)
    roll_like_jnp = probe_roll_like_jnp()

    fwd = functools.partial(lstm_model_forward, hidden_dim=hidden_dim,
                            num_layers=layer_dim, output_dim=output_dim,
                            roll_like_jnp=roll_like_jnp)
    out = jax.jit(fwd)(x, prepped)
    out = jax.block_until_ready(out)

    ref = lstm_model_reference(x, params, hidden_dim=hidden_dim,
                               num_layers=layer_dim, output_dim=output_dim)

    assert out.shape == (batch, seq, output_dim), out.shape
    assert bool(jnp.all(jnp.isfinite(out)))
    max_err = float(jnp.max(jnp.abs(out - ref)))
    assert max_err < 1e-3, f"max abs error {max_err}"

    print("KERNEL_OK")
</pallas_src>

<mosaic_0001>
module attributes {stable_mosaic.version = 11 : i64} {
  func.func @k(%arg0: memref<8x128xf32, #tpu.memory_space<vmem>>, %arg1: memref<8x128xf32, #tpu.memory_space<vmem>>) attributes {dimension_semantics = [], scalar_prefetch = 0 : i64, scratch_operands = 0 : i64, tpu.core_type = #tpu.core_type<tc>} {
    %c0 = arith.constant 0 : index
    %c0_0 = arith.constant 0 : index
    %0 = vector.load %arg0[%c0, %c0_0] : memref<8x128xf32, #tpu.memory_space<vmem>>, vector<8x128xf32>
    %c1_i32 = arith.constant 1 : i32
    %1 = tpu.dynamic_rotate %0 by %c1_i32 dim 1 : vector<8x128xf32>, i32 -> vector<8x128xf32>
    %c0_1 = arith.constant 0 : index
    %c0_2 = arith.constant 0 : index
    %2 = vector.load %arg1[%c0_1, %c0_2] : memref<8x128xf32, #tpu.memory_space<vmem>>, vector<8x128xf32>
    tpu.vector_store %arg1[%c0_1, %c0_2], %1 {strides = array<i32>} : memref<8x128xf32, #tpu.memory_space<vmem>>, vector<8x128xf32>,
    return
  }
}

</mosaic_0001>

<llo_original>
// kernel: tpu_custom_call.1
$region0: #{tpu_custom_call.1}
  #allocation0 [shape = 'u32[]', space=smem, size = 0x4, offset = 0x4, fixed_abs, tag = 'smem constant byte address 0x4 - core index']
  #allocation1 [shape = 'u32[144,128]{1,0:T(1,128)}', space=vmem, size = 0x12000, scoped, tag = 'internal scratch']
  %s0 = inlined_call_operand.hbm [shape: f32[8,128], index: 0, kind: input, shape index: {}]
  %s1 = inlined_call_operand.hbm [shape: f32[8,128], index: 1, kind: output, shape index: {}]
  %s2 = sld [smem:[#allocation0]]
  $region18: #{tpu_custom_call.1} parent=0
    _
  %s4 = ssub.s32 1, %s2
  %s5 = scalar_select 0, %s4, %s2
  $region1: #{tpu_custom_call.1} parent=0
    #allocation2 [shape = 'u8[4096]{0}', space=vmem, size = 0x1000, scoped, tag = 'input window, operand 0, single buffered']
    #allocation3 [shape = 's32[1]{0}', space=sflag, size = 0x4, scoped, tag = 'scoped memory for tpu_custom_call.1']
    #allocation4 [shape = 's32[1]{0}', space=sflag, size = 0x4, scoped, tag = 'scoped memory for tpu_custom_call.1']
    #allocation5 [shape = 'u8[4096]{0}', space=vmem, size = 0x1000, scoped, tag = 'output window, operand 0, single buffered']
    %6 = vsyncpa [#allocation3], 0
    %7 = vsyncpa [#allocation4], 0
    // Predicated region
    $region2: #{tpu_custom_call.1} parent=1 // pred_check
      _
    $region3: #{tpu_custom_call.1} parent=1 // pred_check_branch
      %9 = sbr.rel (0) target = $region5
    $region4: #{tpu_custom_call.1} parent=1 // pred_region
      %s11 = ssub.s32 128, 128
      %12 = vsyncadd [#allocation3], %s11
      %s14 = sshll.u32 [#allocation2], 4
      %s15 = int_to_ptr.vmem [resolvable:$true] %s14
      %17 = dma.hbm_to_vmem [thread:$0]  %s0, 128, %s15, [#allocation3]
    $region5: #{tpu_custom_call.1} parent=1 // pred_fallthru
      _
    // Predicated region
    $region6: #{tpu_custom_call.1} parent=1 // pred_check
      _
    $region7: #{tpu_custom_call.1} parent=1 // pred_check_branch
      %19 = sbr.rel (0) target = $region9
    $region8: #{tpu_custom_call.1} parent=1 // pred_region
      %20 = dma.done [#allocation3], 128
    $region9: #{tpu_custom_call.1} parent=1 // pred_fallthru
      _
    %v21 = vld [vmem:[#allocation2] sm:$0xff]
    %22 = vrot.lane.b32.xlu0 %v21, 1
    %v23 = vpop.permute.xlu0 %22
    %24 = vst [vmem:[#allocation5] sm:$0xff] %v23
    // Predicated region
    $region10: #{tpu_custom_call.1} parent=1 // pred_check
      _
    $region11: #{tpu_custom_call.1} parent=1 // pred_check_branch
      %26 = sbr.rel (0) target = $region13
    $region12: #{tpu_custom_call.1} parent=1 // pred_region
      %s28 = ssub.s32 128, 128
      %29 = vsyncadd [#allocation4], %s28
      %s31 = sshll.u32 [#allocation5], 4
      %s32 = int_to_ptr.vmem [resolvable:$true] %s31
      %34 = dma.vmem_to_hbm [thread:$0]  %s32, 128, %s1, [#allocation4]
    $region13: #{tpu_custom_call.1} parent=1 // pred_fallthru
      _
    // Predicated region
    $region14: #{tpu_custom_call.1} parent=1 // pred_check
      _
    $region15: #{tpu_custom_call.1} parent=1 // pred_check_branch
      %36 = sbr.rel (0) target = $region17
    $region16: #{tpu_custom_call.1} parent=1 // pred_region
      %37 = dma.done [#allocation4], 128
    $region17: #{tpu_custom_call.1} parent=1 // pred_fallthru
      _
    %38 = vsyncpa [#allocation3], 1
    %39 = vsyncpa [#allocation4], 1

</llo_original>
